<compile_context>
chip_gen: v5e
topology: v5e:2x2
jax: 0.10.0
libtpu: 0.0.40
codegen_flags: <defaults>
</compile_context>

<pallas_src>
import jax
import jax.numpy as jnp
from jax import lax
from jax.experimental import pallas as pl
from jax.experimental.pallas import tpu as pltpu

X_features = ['feature_1', 'feature_2', 'feature_3', 'feature_4',
              'feature_5', 'feature_6', 'feature_7', 'feature_8']

IN_DIM = len(X_features)   # 8
H1 = 50
H2 = 35
OUT = 1

# Default upper bound on the batch tile; per-step working set at 2048 is well
# under the v7x 32 MiB scoped-VMEM default (x tile ~1 MiB, activations <1 MiB).
MAX_TILE_B = 2048


def _round_up(x, m):
    return ((x + m - 1) // m) * m


def _mlp_kernel(x_ref, w1_ref, b1_ref, w2_ref, b2_ref, w3_ref, b3_ref, o_ref):
    """Feature-major (batch-on-lanes) 3-layer MLP over one batch tile.

    x_ref:  (TILE_B, IN_DIM)
    w*_ref: (out, in)   -- PyTorch nn.Linear weight layout
    b*_ref: (out, 1)
    o_ref:  (1, TILE_B) -- lane-dense output row
    """
    x = x_ref[...]                                   # (TILE_B, IN_DIM)

    # h1^T = tanh(W1 @ x^T + b1): contract IN_DIM (last dim of both operands,
    # the "NT" form the MXU consumes natively) -> (H1, TILE_B).
    h1t = jnp.tanh(
        lax.dot_general(w1_ref[...], x, (((1,), (1,)), ((), ())),
                        preferred_element_type=jnp.float32)
        + b1_ref[...])
    # h2^T = tanh(W2 @ h1^T + b2) -> (H2, TILE_B)
    h2t = jnp.tanh(
        jnp.dot(w2_ref[...], h1t, preferred_element_type=jnp.float32)
        + b2_ref[...])
    # o^T = W3 @ h2^T + b3 -> (1, TILE_B), lane-dense store.
    ot = (jnp.dot(w3_ref[...], h2t, preferred_element_type=jnp.float32)
          + b3_ref[...])
    o_ref[...] = ot.astype(o_ref.dtype)


def mlp_regressor_forward(x, params, *, tile_b=None):
    """x: (B, 8) float32 -> (B,) float32 (matches PyTorch o.view(-1))."""
    w1, b1, w2, b2, w3, b3 = params
    B = x.shape[0]

    if tile_b is None:
        # Batch sits on lanes inside the kernel -> keep tiles a multiple of 128.
        tile_b = min(MAX_TILE_B, _round_up(max(B, 1), 128))
    b_pad = _round_up(B, tile_b)
    if b_pad != B:
        x = jnp.pad(x, ((0, b_pad - B), (0, 0)))
    num_tiles = b_pad // tile_b

    out = pl.pallas_call(
        _mlp_kernel,
        out_shape=jax.ShapeDtypeStruct((1, b_pad), jnp.float32),
        grid=(num_tiles,),
        in_specs=[
            # x tiles stream across the batch grid.
            pl.BlockSpec((tile_b, IN_DIM), lambda i: (i, 0)),
            # Parameters: same block every step -> fetched once, stay resident.
            pl.BlockSpec((H1, IN_DIM), lambda i: (0, 0)),
            pl.BlockSpec((H1, 1), lambda i: (0, 0)),
            pl.BlockSpec((H2, H1), lambda i: (0, 0)),
            pl.BlockSpec((H2, 1), lambda i: (0, 0)),
            pl.BlockSpec((OUT, H2), lambda i: (0, 0)),
            pl.BlockSpec((OUT, 1), lambda i: (0, 0)),
        ],
        # Lane-dense output row (last dim = tile_b, a multiple of 128).
        out_specs=pl.BlockSpec((1, tile_b), lambda i: (0, i)),
        compiler_params=pltpu.CompilerParams(
            dimension_semantics=("parallel",)),
    )(x, w1, b1, w2, b2, w3, b3)
    return out.reshape(-1)[:B]  # o.view(-1)


def init_params(key):
    """Deterministic init mimicking PyTorch nn.Linear default:
    U(-1/sqrt(fan_in), 1/sqrt(fan_in)); weights kept in (out, in) layout."""
    def linear(key, fan_in, fan_out):
        kw, kb = jax.random.split(key)
        bound = 1.0 / jnp.sqrt(jnp.float32(fan_in))
        w = jax.random.uniform(kw, (fan_out, fan_in), jnp.float32, -bound, bound)
        b = jax.random.uniform(kb, (fan_out, 1), jnp.float32, -bound, bound)
        return w, b

    k1, k2, k3 = jax.random.split(key, 3)
    w1, b1 = linear(k1, IN_DIM, H1)
    w2, b2 = linear(k2, H1, H2)
    w3, b3 = linear(k3, H2, OUT)
    return w1, b1, w2, b2, w3, b3


def _reference(x, params):
    w1, b1, w2, b2, w3, b3 = params
    h = jnp.tanh(x @ w1.T + b1.reshape(1, -1))
    h = jnp.tanh(h @ w2.T + b2.reshape(1, -1))
    return (h @ w3.T + b3.reshape(1, -1)).reshape(-1)


if __name__ == "__main__":
    key = jax.random.PRNGKey(0)
    kx, kx2, kp = jax.random.split(key, 3)
    params = init_params(kp)

    # Small batch (pads up to one 128-row tile).
    B = 8
    x = jax.random.normal(kx, (B, IN_DIM), jnp.float32)
    y = mlp_regressor_forward(x, params)
    jax.block_until_ready(y)
    assert y.shape == (B,)
    assert jnp.allclose(y, _reference(x, params), atol=1e-5, rtol=1e-5)

    # Multi-tile + remainder case: B=300 with tile_b=128 -> grid of 3 tiles.
    B2 = 300
    x2 = jax.random.normal(kx2, (B2, IN_DIM), jnp.float32)
    y2 = mlp_regressor_forward(x2, params, tile_b=128)
    jax.block_until_ready(y2)
    assert y2.shape == (B2,)
    assert jnp.allclose(y2, _reference(x2, params), atol=1e-5, rtol=1e-5)

    print("KERNEL_OK")
</pallas_src>

<mosaic_0001>
module attributes {stable_mosaic.version = 11 : i64} {
  func.func @_mlp_kernel(%arg0: i32, %arg1: memref<128x8xf32, #tpu.memory_space<vmem>>, %arg2: memref<50x8xf32, #tpu.memory_space<vmem>>, %arg3: memref<50x1xf32, #tpu.memory_space<vmem>>, %arg4: memref<35x50xf32, #tpu.memory_space<vmem>>, %arg5: memref<35x1xf32, #tpu.memory_space<vmem>>, %arg6: memref<1x35xf32, #tpu.memory_space<vmem>>, %arg7: memref<1x1xf32, #tpu.memory_space<vmem>>, %arg8: memref<1x128xf32, #tpu.memory_space<vmem>>) attributes {dimension_semantics = [#tpu.dimension_semantics<parallel>], iteration_bounds = array<i64: 1>, scalar_prefetch = 0 : i64, scratch_operands = 0 : i64, tpu.core_type = #tpu.core_type<tc>, window_params = [{transform_indices = @transform_0, window_bounds = array<i64: 128, 8>}, {pipeline_mode = #tpu.pipeline_mode<synchronous>, transform_indices = @transform_1, window_bounds = array<i64: 50, 8>}, {pipeline_mode = #tpu.pipeline_mode<synchronous>, transform_indices = @transform_2, window_bounds = array<i64: 50, 1>}, {pipeline_mode = #tpu.pipeline_mode<synchronous>, transform_indices = @transform_3, window_bounds = array<i64: 35, 50>}, {pipeline_mode = #tpu.pipeline_mode<synchronous>, transform_indices = @transform_4, window_bounds = array<i64: 35, 1>}, {pipeline_mode = #tpu.pipeline_mode<synchronous>, transform_indices = @transform_5, window_bounds = array<i64: 1, 35>}, {pipeline_mode = #tpu.pipeline_mode<synchronous>, transform_indices = @transform_6, window_bounds = array<i64: 1, 1>}, {transform_indices = @transform_7, window_bounds = array<i64: 1, 128>}]} {
    %c0 = arith.constant 0 : index
    %c0_0 = arith.constant 0 : index
    %0 = vector.load %arg1[%c0, %c0_0] : memref<128x8xf32, #tpu.memory_space<vmem>>, vector<128x8xf32>
    %c0_1 = arith.constant 0 : index
    %c0_2 = arith.constant 0 : index
    %1 = vector.load %arg2[%c0_1, %c0_2] : memref<50x8xf32, #tpu.memory_space<vmem>>, vector<50x8xf32>
    %cst = arith.constant dense<0.000000e+00> : vector<50x128xf32>
    %2 = tpu.matmul %1, %0, %cst {dimension_numbers = #tpu.dot_dimension_numbers<[1], [1], [0], [0], [0, 0, 1, 0], [], []>} : vector<50x8xf32>, vector<128x8xf32>, vector<50x128xf32> -> vector<50x128xf32>
    %c0_3 = arith.constant 0 : index
    %c0_4 = arith.constant 0 : index
    %3 = vector.load %arg3[%c0_3, %c0_4] : memref<50x1xf32, #tpu.memory_space<vmem>>, vector<50x1xf32>
    %4 = vector.broadcast %3 : vector<50x1xf32> to vector<50x128xf32>
    %5 = arith.addf %2, %4 : vector<50x128xf32>
    %6 = math.tanh %5 : vector<50x128xf32>
    %c0_5 = arith.constant 0 : index
    %c0_6 = arith.constant 0 : index
    %7 = vector.load %arg4[%c0_5, %c0_6] : memref<35x50xf32, #tpu.memory_space<vmem>>, vector<35x50xf32>
    %cst_7 = arith.constant dense<0.000000e+00> : vector<35x128xf32>
    %8 = tpu.matmul %7, %6, %cst_7 {dimension_numbers = #tpu.dot_dimension_numbers<[1], [0], [0], [1], [0, 0, 1, 1], [], []>} : vector<35x50xf32>, vector<50x128xf32>, vector<35x128xf32> -> vector<35x128xf32>
    %c0_8 = arith.constant 0 : index
    %c0_9 = arith.constant 0 : index
    %9 = vector.load %arg5[%c0_8, %c0_9] : memref<35x1xf32, #tpu.memory_space<vmem>>, vector<35x1xf32>
    %10 = vector.broadcast %9 : vector<35x1xf32> to vector<35x128xf32>
    %11 = arith.addf %8, %10 : vector<35x128xf32>
    %12 = math.tanh %11 : vector<35x128xf32>
    %c0_10 = arith.constant 0 : index
    %c0_11 = arith.constant 0 : index
    %13 = vector.load %arg6[%c0_10, %c0_11] : memref<1x35xf32, #tpu.memory_space<vmem>>, vector<1x35xf32>
    %cst_12 = arith.constant dense<0.000000e+00> : vector<1x128xf32>
    %14 = tpu.matmul %13, %12, %cst_12 {dimension_numbers = #tpu.dot_dimension_numbers<[1], [0], [0], [1], [0, 0, 1, 1], [], []>} : vector<1x35xf32>, vector<35x128xf32>, vector<1x128xf32> -> vector<1x128xf32>
    %c0_13 = arith.constant 0 : index
    %c0_14 = arith.constant 0 : index
    %15 = vector.load %arg7[%c0_13, %c0_14] : memref<1x1xf32, #tpu.memory_space<vmem>>, vector<1x1xf32>
    %16 = vector.broadcast %15 : vector<1x1xf32> to vector<1x128xf32>
    %17 = arith.addf %14, %16 : vector<1x128xf32>
    %c0_15 = arith.constant 0 : index
    %c0_16 = arith.constant 0 : index
    %18 = vector.load %arg8[%c0_15, %c0_16] : memref<1x128xf32, #tpu.memory_space<vmem>>, vector<1x128xf32>
    tpu.vector_store %arg8[%c0_15, %c0_16], %17 {strides = array<i32>} : memref<1x128xf32, #tpu.memory_space<vmem>>, vector<1x128xf32>,
    return
  }
  func.func @transform_0(%arg0: i32) -> (i32, i32) {
    %c0_i32 = arith.constant 0 : i32
    %c0_i32_0 = arith.constant 0 : i32
    return %arg0, %c0_i32 : i32, i32
  }
  func.func @transform_1(%arg0: i32) -> (i32, i32) {
    %c0_i32 = arith.constant 0 : i32
    %c0_i32_0 = arith.constant 0 : i32
    %c0_i32_1 = arith.constant 0 : i32
    return %c0_i32, %c0_i32_0 : i32, i32
  }
  func.func @transform_2(%arg0: i32) -> (i32, i32) {
    %c0_i32 = arith.constant 0 : i32
    %c0_i32_0 = arith.constant 0 : i32
    %c0_i32_1 = arith.constant 0 : i32
    return %c0_i32, %c0_i32_0 : i32, i32
  }
  func.func @transform_3(%arg0: i32) -> (i32, i32) {
    %c0_i32 = arith.constant 0 : i32
    %c0_i32_0 = arith.constant 0 : i32
    %c0_i32_1 = arith.constant 0 : i32
    return %c0_i32, %c0_i32_0 : i32, i32
  }
  func.func @transform_4(%arg0: i32) -> (i32, i32) {
    %c0_i32 = arith.constant 0 : i32
    %c0_i32_0 = arith.constant 0 : i32
    %c0_i32_1 = arith.constant 0 : i32
    return %c0_i32, %c0_i32_0 : i32, i32
  }
  func.func @transform_5(%arg0: i32) -> (i32, i32) {
    %c0_i32 = arith.constant 0 : i32
    %c0_i32_0 = arith.constant 0 : i32
    %c0_i32_1 = arith.constant 0 : i32
    return %c0_i32, %c0_i32_0 : i32, i32
  }
  func.func @transform_6(%arg0: i32) -> (i32, i32) {
    %c0_i32 = arith.constant 0 : i32
    %c0_i32_0 = arith.constant 0 : i32
    %c0_i32_1 = arith.constant 0 : i32
    return %c0_i32, %c0_i32_0 : i32, i32
  }
  func.func @transform_7(%arg0: i32) -> (i32, i32) {
    %c0_i32 = arith.constant 0 : i32
    %c0_i32_0 = arith.constant 0 : i32
    return %c0_i32, %arg0 : i32, i32
  }
}

</mosaic_0001>

<llo_original>
// kernel: tpu_custom_call.1
$region0: #{tpu_custom_call.1}
  #allocation0 [shape = 'u32[]', space=smem, size = 0x4, offset = 0x4, fixed_abs, tag = 'smem constant byte address 0x4 - core index']
  #allocation1 [shape = 'u32[72,128]{1,0:T(1,128)}', space=vmem, size = 0x9000, scoped, tag = 'internal scratch']
  #allocation2 [shape = 'f32[1,1]{1,0:T(1,128)S(1)}', space=vmem, size = 0x200, scoped, tag = 'scoped memory for tpu_custom_call.1']
  %s0 = inlined_call_operand.vmem [shape: f32[128,8], index: 0, kind: input, shape index: {}]
  %s1 = inlined_call_operand.vmem [shape: f32[50,8], index: 1, kind: input, shape index: {}]
  %s2 = inlined_call_operand.vmem [shape: f32[50,1], index: 2, kind: input, shape index: {}]
  %s3 = inlined_call_operand.vmem [shape: f32[35,50], index: 3, kind: input, shape index: {}]
  %s4 = inlined_call_operand.vmem [shape: f32[35,1], index: 4, kind: input, shape index: {}]
  %s5 = inlined_call_operand.vmem [shape: f32[1,35], index: 5, kind: input, shape index: {}]
  %s6 = inlined_call_operand.<no memory space> [shape: f32[1,1], index: 6, kind: input, shape index: {}]
  %s7 = inlined_call_operand.hbm [shape: f32[1,128], index: 7, kind: output, shape index: {}]
  %s8 = sld [smem:[#allocation0]]
  $region38: #{tpu_custom_call.1} parent=0
    _
  %s10 = ssub.s32 1, %s8
  %s11 = scalar_select 0, %s10, %s8
  %v12 = vstv %s6
  %13 = vst [vmem:[#allocation2] sm:$0x1] %v12
  $region1: #{tpu_custom_call.1} parent=0
    #allocation3 [shape = 'u8[512]{0}', space=vmem, size = 0x400, scoped, tag = 'output window, operand 0, single buffered']
    #allocation4 [shape = 's32[1]{0}', space=sflag, size = 0x4, scoped, tag = 'scoped memory for tpu_custom_call.1']
    %14 = vsyncpa [#allocation4], 0
    // Predicated region
    $region2: #{tpu_custom_call.1} parent=1 // pred_check
      _
    $region3: #{tpu_custom_call.1} parent=1 // pred_check_branch
      %16 = sbr.rel (0) target = $region5
    $region4: #{tpu_custom_call.1} parent=1 // pred_region
      _
    $region5: #{tpu_custom_call.1} parent=1 // pred_fallthru
      _
    // Predicated region
    $region6: #{tpu_custom_call.1} parent=1 // pred_check
      _
    $region7: #{tpu_custom_call.1} parent=1 // pred_check_branch
      %18 = sbr.rel (0) target = $region9
    $region8: #{tpu_custom_call.1} parent=1 // pred_region
      _
    $region9: #{tpu_custom_call.1} parent=1 // pred_fallthru
      _
    // Predicated region
    $region10: #{tpu_custom_call.1} parent=1 // pred_check
      _
    $region11: #{tpu_custom_call.1} parent=1 // pred_check_branch
      %20 = sbr.rel (0) target = $region13
    $region12: #{tpu_custom_call.1} parent=1 // pred_region
      _
    $region13: #{tpu_custom_call.1} parent=1 // pred_fallthru
      _
    // Predicated region
    $region14: #{tpu_custom_call.1} parent=1 // pred_check
      _
    $region15: #{tpu_custom_call.1} parent=1 // pred_check_branch
      %22 = sbr.rel (0) target = $region17
    $region16: #{tpu_custom_call.1} parent=1 // pred_region
      _
    $region17: #{tpu_custom_call.1} parent=1 // pred_fallthru
      _
    // Predicated region
    $region18: #{tpu_custom_call.1} parent=1 // pred_check
      _
    $region19: #{tpu_custom_call.1} parent=1 // pred_check_branch
      %24 = sbr.rel (0) target = $region21
    $region20: #{tpu_custom_call.1} parent=1 // pred_region
      _
    $region21: #{tpu_custom_call.1} parent=1 // pred_fallthru
      _
    // Predicated region
    $region22: #{tpu_custom_call.1} parent=1 // pred_check
      _
    $region23: #{tpu_custom_call.1} parent=1 // pred_check_branch
      %26 = sbr.rel (0) target = $region25
    $region24: #{tpu_custom_call.1} parent=1 // pred_region
      _
    $region25: #{tpu_custom_call.1} parent=1 // pred_fallthru
      _
    // Predicated region
    $region26: #{tpu_custom_call.1} parent=1 // pred_check
      _
    $region27: #{tpu_custom_call.1} parent=1 // pred_check_branch
      %28 = sbr.rel (0) target = $region29
    $region28: #{tpu_custom_call.1} parent=1 // pred_region
      _
    $region29: #{tpu_custom_call.1} parent=1 // pred_fallthru
      _
    %v29 = vld [vmem:[%s0] sm:$0xff]
    %v30 = vld [vmem:[%s0 + $0x8] sm:$0xff]
    %v31 = vld [vmem:[%s0 + $0x10] sm:$0xff]
    %v32 = vld [vmem:[%s0 + $0x18] sm:$0xff]
    %v33 = vld [vmem:[%s0 + $0x20] sm:$0xff]
    %v34 = vld [vmem:[%s0 + $0x28] sm:$0xff]
    %v35 = vld [vmem:[%s0 + $0x30] sm:$0xff]
    %v36 = vld [vmem:[%s0 + $0x38] sm:$0xff]
    %v37 = vld [vmem:[%s0 + $0x40] sm:$0xff]
    %v38 = vld [vmem:[%s0 + $0x48] sm:$0xff]
    %v39 = vld [vmem:[%s0 + $0x50] sm:$0xff]
    %v40 = vld [vmem:[%s0 + $0x58] sm:$0xff]
    %v41 = vld [vmem:[%s0 + $0x60] sm:$0xff]
    %v42 = vld [vmem:[%s0 + $0x68] sm:$0xff]
    %v43 = vld [vmem:[%s0 + $0x70] sm:$0xff]
    %v44 = vld [vmem:[%s0 + $0x78] sm:$0xff]
    %v45 = vld [vmem:[%s1] sm:$0xff]
    %v46 = vld [vmem:[%s1 + $0x8] sm:$0xff]
    %v47 = vld [vmem:[%s1 + $0x10] sm:$0xff]
    %v48 = vld [vmem:[%s1 + $0x18] sm:$0xff]
    %v49 = vld [vmem:[%s1 + $0x20] sm:$0xff]
    %v50 = vld [vmem:[%s1 + $0x28] sm:$0xff]
    %v51 = vld [vmem:[%s1 + $0x30] sm:$0x3]
    %v52 = vld [vmem:[%s2] sm:$0xff]
    %v53 = vld [vmem:[%s2 + $0x8] sm:$0xff]
    %v54 = vld [vmem:[%s2 + $0x10] sm:$0xff]
    %v55 = vld [vmem:[%s2 + $0x18] sm:$0xff]
    %v56 = vld [vmem:[%s2 + $0x20] sm:$0xff]
    %v57 = vld [vmem:[%s2 + $0x28] sm:$0xff]
    %v58 = vld [vmem:[%s2 + $0x30] sm:$0x3]
    %60 = vset.pattern.permute.xlu0 0
    %61 = vperm.xlu0 %60, %v52
    %v62 = vpop.permute.xlu0 %61
    %65 = vset.pattern.permute.xlu0 0
    %66 = vperm.xlu0 %65, %v53
    %v67 = vpop.permute.xlu0 %66
    %70 = vset.pattern.permute.xlu0 0
    %71 = vperm.xlu0 %70, %v54
    %v72 = vpop.permute.xlu0 %71
    %75 = vset.pattern.permute.xlu0 0
    %76 = vperm.xlu0 %75, %v55
    %v77 = vpop.permute.xlu0 %76
    %80 = vset.pattern.permute.xlu0 0
    %81 = vperm.xlu0 %80, %v56
    %v82 = vpop.permute.xlu0 %81
    %85 = vset.pattern.permute.xlu0 0
    %86 = vperm.xlu0 %85, %v57
    %v87 = vpop.permute.xlu0 %86
    %90 = vset.pattern.permute.xlu0 0
    %91 = vperm.xlu0 %90, %v58
    %v92 = vpop.permute.xlu0 %91
    %vm94 = vcmask 64512
    %v96 = vsel %vm94, %v45, 0
    %v99 = vsel %vm94, %v46, 0
    %v102 = vsel %vm94, %v47, 0
    %v105 = vsel %vm94, %v48, 0
    %v108 = vsel %vm94, %v49, 0
    %v111 = vsel %vm94, %v50, 0
    %v114 = vsel %vm94, %v51, 0
    %v117 = vsel %vm94, %v29, 0
    %v120 = vsel %vm94, %v30, 0
    %v123 = vsel %vm94, %v31, 0
    %v126 = vsel %vm94, %v32, 0
    %v129 = vsel %vm94, %v33, 0
    %v132 = vsel %vm94, %v34, 0
    %v135 = vsel %vm94, %v35, 0
    %v138 = vsel %vm94, %v36, 0
    %v141 = vsel %vm94, %v37, 0
    %v144 = vsel %vm94, %v38, 0
    %v147 = vsel %vm94, %v39, 0
    %v150 = vsel %vm94, %v40, 0
    %v153 = vsel %vm94, %v41, 0
    %v156 = vsel %vm94, %v42, 0
    %v159 = vsel %vm94, %v43, 0
    %v162 = vsel %vm94, %v44, 0
    %164 = vmatpush.xpose.msra.mxu0 %v162
    %165 = vmatpush.xpose.msra.mxu0 %v159
    %166 = vmatpush.xpose.msra.mxu0 %v156
    %167 = vmatpush.xpose.msra.mxu0 %v153
    %168 = vmatpush.xpose.msra.mxu0 %v150
    %169 = vmatpush.xpose.msra.mxu0 %v147
    %170 = vmatpush.xpose.msra.mxu0 %v144
    %171 = vmatpush.xpose.msra.mxu0 %v141
    %172 = vmatpush.xpose.msra.mxu0 %v138
    %173 = vmatpush.xpose.msra.mxu0 %v135
    %174 = vmatpush.xpose.msra.mxu0 %v132
    %175 = vmatpush.xpose.msra.mxu0 %v129
    %176 = vmatpush.xpose.msra.mxu0 %v126
    %177 = vmatpush.xpose.msra.mxu0 %v123
    %178 = vmatpush.xpose.msra.mxu0 %v120
    %179 = vmatpush.xpose.msra.mxu0 %v117
    %180 = vmatmul.f32.gmra.mxu0 %v96
    %v181 = vpop.f32.mrf.mxu0
    %v182 = vadd.f32 %v62, %v181
    %183 = vmatmul.f32.gmra.mxu0 %v99
    %v184 = vpop.f32.mrf.mxu0
    %v185 = vadd.f32 %v67, %v184
    %186 = vmatmul.f32.gmra.mxu0 %v102
    %v187 = vpop.f32.mrf.mxu0
    %v188 = vadd.f32 %v72, %v187
    %189 = vmatmul.f32.gmra.mxu0 %v105
    %v190 = vpop.f32.mrf.mxu0
    %v191 = vadd.f32 %v77, %v190
    %192 = vmatmul.f32.gmra.mxu0 %v108
    %v193 = vpop.f32.mrf.mxu0
    %v194 = vadd.f32 %v82, %v193
    %195 = vmatmul.f32.gmra.mxu0 %v111
    %v196 = vpop.f32.mrf.mxu0
    %v197 = vadd.f32 %v87, %v196
    %198 = vmatmul.f32.gmra.mxu0 %v114
    %v199 = vpop.f32.mrf.mxu0
    %v200 = vadd.f32 %v92, %v199
    %201 = vdwg.mxu0
    %v202 = vtanh.pop %v182
    %v203 = vtanh.pop %v185
    %v204 = vtanh.pop %v188
    %v205 = vtanh.pop %v191
    %v206 = vtanh.pop %v194
    %v207 = vtanh.pop %v197
    %v208 = vtanh.pop %v200
    %v209 = vld [vmem:[%s3] sm:$0xff]
    %v210 = vld [vmem:[%s3 + $0x8] sm:$0xff]
    %v211 = vld [vmem:[%s3 + $0x10] sm:$0xff]
    %v212 = vld [vmem:[%s3 + $0x18] sm:$0xff]
    %v213 = vld [vmem:[%s3 + $0x20] sm:$0x7]
    %v214 = vld [vmem:[%s4] sm:$0xff]
    %v215 = vld [vmem:[%s4 + $0x8] sm:$0xff]
    %v216 = vld [vmem:[%s4 + $0x10] sm:$0xff]
    %v217 = vld [vmem:[%s4 + $0x18] sm:$0xff]
    %v218 = vld [vmem:[%s4 + $0x20] sm:$0x7]
    %220 = vset.pattern.permute.xlu0 0
    %221 = vperm.xlu0 %220, %v214
    %v222 = vpop.permute.xlu0 %221
    %225 = vset.pattern.permute.xlu0 0
    %226 = vperm.xlu0 %225, %v215
    %v227 = vpop.permute.xlu0 %226
    %230 = vset.pattern.permute.xlu0 0
    %231 = vperm.xlu0 %230, %v216
    %v232 = vpop.permute.xlu0 %231
    %235 = vset.pattern.permute.xlu0 0
    %236 = vperm.xlu0 %235, %v217
    %v237 = vpop.permute.xlu0 %236
    %240 = vset.pattern.permute.xlu0 0
    %241 = vperm.xlu0 %240, %v218
    %v242 = vpop.permute.xlu0 %241
    %vm244 = vcmask 408576
    %v246 = vsel %vm244, %v209, 0
    %v249 = vsel %vm244, %v210, 0
    %v252 = vsel %vm244, %v211, 0
    %v255 = vsel %vm244, %v212, 0
    %v258 = vsel %vm244, %v213, 0
    %vm260 = vcmask 1041408
    %v262 = vsel %vm260, %v208, 0
    %264 = vmatpush.msra.mxu0 0.0
    %265 = vmatpush.msra.mxu0 0.0
    %266 = vmatpush.msra.mxu0 0.0
    %267 = vmatpush.msra.mxu0 0.0
    %268 = vmatpush.msra.mxu0 0.0
    %269 = vmatpush.msra.mxu0 0.0
    %270 = vmatpush.msra.mxu0 0.0
    %271 = vmatpush.msra.mxu0 0.0
    %272 = vmatpush.msra.mxu0 0.0
    %273 = vmatpush.msra.mxu0 %v262
    %274 = vmatpush.msra.mxu0 %v207
    %275 = vmatpush.msra.mxu0 %v206
    %276 = vmatpush.msra.mxu0 %v205
    %277 = vmatpush.msra.mxu0 %v204
    %278 = vmatpush.msra.mxu0 %v203
    %279 = vmatpush.msra.mxu0 %v202
    %280 = vmatmul.f32.gmra.mxu0 %v246
    %v281 = vpop.f32.mrf.mxu0
    %v282 = vadd.f32 %v222, %v281
    %283 = vmatmul.f32.gmra.mxu0 %v249
    %v284 = vpop.f32.mrf.mxu0
    %v285 = vadd.f32 %v227, %v284
    %286 = vmatmul.f32.gmra.mxu0 %v252
    %v287 = vpop.f32.mrf.mxu0
    %v288 = vadd.f32 %v232, %v287
    %289 = vmatmul.f32.gmra.mxu0 %v255
    %v290 = vpop.f32.mrf.mxu0
    %v291 = vadd.f32 %v237, %v290
    %292 = vmatmul.f32.gmra.mxu0 %v258
    %v293 = vpop.f32.mrf.mxu0
    %v294 = vadd.f32 %v242, %v293
    %295 = vdwg.mxu0
    %v296 = vtanh.pop %v282
    %v297 = vtanh.pop %v285
    %v298 = vtanh.pop %v288
    %v299 = vtanh.pop %v291
    %v300 = vtanh.pop %v294
    %v301 = vld [vmem:[%s5] sm:$0x1]
    %v302 = vld [vmem:[#allocation2] sm:$0x1]
    %304 = vset.pattern.permute.xlu0 0
    %305 = vperm.xlu0 %304, %v302
    %v306 = vpop.permute.xlu0 %305
    %v308 = vperm.slane %v306, 0
    %vm309 = vcmask 285696
    %v311 = vsel %vm309, %v301, 0
    %vm313 = vcmask 1042432
    %v315 = vsel %vm313, %v300, 0
    %317 = vmatpush.msra.mxu0 0.0
    %318 = vmatpush.msra.mxu0 0.0
    %319 = vmatpush.msra.mxu0 0.0
    %320 = vmatpush.msra.mxu0 0.0
    %321 = vmatpush.msra.mxu0 0.0
    %322 = vmatpush.msra.mxu0 0.0
    %323 = vmatpush.msra.mxu0 0.0
    %324 = vmatpush.msra.mxu0 0.0
    %325 = vmatpush.msra.mxu0 0.0
    %326 = vmatpush.msra.mxu0 0.0
    %327 = vmatpush.msra.mxu0 0.0
    %328 = vmatpush.msra.mxu0 %v315
    %329 = vmatpush.msra.mxu0 %v299
    %330 = vmatpush.msra.mxu0 %v298
    %331 = vmatpush.msra.mxu0 %v297
    %332 = vmatpush.msra.mxu0 %v296
    %333 = vmatmul.f32.gmra.mxu0 %v311
    %v334 = vpop.f32.mrf.mxu0
    %v335 = vadd.f32 %v308, %v334
    %336 = vdwg.mxu0
    %337 = vst [vmem:[#allocation3] sm:$0x1] %v335
    // Predicated region
    $region30: #{tpu_custom_call.1} parent=1 // pred_check
      _
    $region31: #{tpu_custom_call.1} parent=1 // pred_check_branch
      %339 = sbr.rel (0) target = $region33
    $region32: #{tpu_custom_call.1} parent=1 // pred_region
      %341 = vsyncadd [#allocation4], 0
      %s343 = sshll.u32 [#allocation3], 4
      %s344 = int_to_ptr.vmem [resolvable:$true] %s343
      %s345 = sshll.u32 %s7, 4
      %s346 = int_to_ptr.hbm [resolvable:$true] %s345
      %348 = dma.vmem_to_hbm [thread:$0]  %s344, 16, %s346, [#allocation4]
    $region33: #{tpu_custom_call.1} parent=1 // pred_fallthru
      _
    // Predicated region
    $region34: #{tpu_custom_call.1} parent=1 // pred_check
      _
    $region35: #{tpu_custom_call.1} parent=1 // pred_check_branch
      %350 = sbr.rel (0) target = $region37
    $region36: #{tpu_custom_call.1} parent=1 // pred_region
      %352 = dma.done [#allocation4], 16
    $region37: #{tpu_custom_call.1} parent=1 // pred_fallthru
      _
    %353 = vsyncpa [#allocation4], 1

</llo_original>
